<compile_context>
chip_gen: v6e
topology: v6e:2x2x1
jax: 0.10.0
libtpu: 0.0.40
codegen_flags: <defaults>
</compile_context>

<pallas_src>
import jax
import jax.numpy as jnp
from jax.experimental import pallas as pl
from jax.experimental.pallas import tpu as pltpu


def affine_kernel(x_ref, wt_ref, b_ref, o_ref):
    # x_ref : (tile_b, 11)  natural input layout (no wrapper transpose)
    # wt_ref: (4, 11)       W_eff^T, VMEM-resident across the whole grid
    # b_ref : (4, 1)        b_eff^T, broadcast along the lane axis
    # o_ref : (4, tile_b)   lane-dense output stores
    acc = jax.lax.dot_general(
        wt_ref[...], x_ref[...],
        dimension_numbers=(((1,), (1,)), ((), ())),   # contract shared d_in
        preferred_element_type=jnp.float32)
    o_ref[...] = (acc + b_ref[...]).astype(o_ref.dtype)


def collapse_params(params):
    """Fold the 4 bias-only affine layers into a single (W_eff, b_eff).

    NOTE: only valid because Net.forward never applies self.relu.  If the
    model is ever changed to apply the activation, this collapse is wrong.
    """
    (w1, b1), (w2, b2), (w3, b3), (w4, b4) = params
    w_eff = w1 @ w2 @ w3 @ w4                             # (11, 4)
    b_eff = ((b1 @ w2 + b2) @ w3 + b3) @ w4 + b4          # (1, 4)
    return w_eff, b_eff


def _pick_tile_b(batch):
    """Batch-tile selection per the perf review."""
    if batch <= 4096:
        return batch          # single grid step: no per-step overhead at all
    # Large batch: big tiles (amortize ~0.35us/step) but at least 2 steps so
    # both v7x TensorCores have work; cap at 8192 so the lane-padded
    # (tile_b, 128) x tile stays under every chip's default scoped VMEM limit.
    half = -(-batch // 2)
    tile = -(-half // 128) * 128      # round up to a multiple of 128
    return min(8192, tile)


def _affine_pallas(x, w_t, b_c):
    """x: (B, 11) f32; w_t: (4, 11); b_c: (4, 1). Returns (4, B) f32."""
    B, d_in = x.shape
    d_out = w_t.shape[0]
    tile_b = _pick_tile_b(B)
    grid = (pl.cdiv(B, tile_b),)

    # If B % tile_b != 0 the last x block reads padded rows; this is safe
    # because every output column is independent and Pallas masks writeback.
    return pl.pallas_call(
        affine_kernel,
        out_shape=jax.ShapeDtypeStruct((d_out, B), jnp.float32),
        grid_spec=pltpu.PrefetchScalarGridSpec(
            num_scalar_prefetch=0,
            grid=grid,
            in_specs=[
                pl.BlockSpec((tile_b, d_in), lambda i: (i, 0)),  # x tile
                pl.BlockSpec(w_t.shape, lambda i: (0, 0)),       # resident W^T
                pl.BlockSpec(b_c.shape, lambda i: (0, 0)),       # resident b
            ],
            out_specs=pl.BlockSpec((d_out, tile_b), lambda i: (0, i)),
        ),
        compiler_params=pltpu.CompilerParams(
            dimension_semantics=("parallel",)),
    )(x, w_t, b_c)


def make_net_forward(params, *, transposed_output=False):
    """Collapse the params once and return a jitted forward fn.

    transposed_output=True returns the lane-dense (4, B) kernel output
    directly (no extra pass over the output); the default False matches the
    PyTorch module's (B, 4) layout.
    """
    w_eff, b_eff = collapse_params(params)                # once, at setup time
    w_t = jnp.asarray(w_eff.T, jnp.float32)               # (4, 11)
    b_c = jnp.asarray(b_eff.T, jnp.float32)               # (4, 1)

    @jax.jit
    def fwd(x):
        out_t = _affine_pallas(x.astype(jnp.float32), w_t, b_c)   # (4, B)
        return out_t if transposed_output else out_t.T            # (B, 4)

    return fwd


def init_params(key):
    """Deterministic init mimicking nn.Linear default (uniform in
    [-1/sqrt(fan_in), 1/sqrt(fan_in)]). Weights stored as (in, out)."""
    dims = [(11, 32), (32, 64), (64, 32), (32, 4)]
    params = []
    for (fan_in, fan_out) in dims:
        key, kw, kb = jax.random.split(key, 3)
        bound = 1.0 / jnp.sqrt(jnp.float32(fan_in))
        w = jax.random.uniform(kw, (fan_in, fan_out), jnp.float32,
                               minval=-bound, maxval=bound)
        b = jax.random.uniform(kb, (1, fan_out), jnp.float32,
                               minval=-bound, maxval=bound)
        params.append((w, b))
    return params


def net_forward_ref(x, params):
    """Plain-JAX reference: the original un-collapsed 4-layer forward."""
    h = x
    for (w, b) in params:
        h = h @ w + b
    return h


if __name__ == "__main__":
    key = jax.random.PRNGKey(0)
    kx, kp = jax.random.split(key)

    B = 512                    # small batch -> single grid step, no pipelining
    x = jax.random.normal(kx, (B, 11), jnp.float32)
    params = init_params(kp)

    fwd = make_net_forward(params)          # collapse + jit happen once here
    out = jax.block_until_ready(fwd(x))

    ref = net_forward_ref(x, params)
    assert out.shape == (B, 4), out.shape
    max_err = float(jnp.max(jnp.abs(out - ref)))
    assert jnp.allclose(out, ref, atol=5e-4, rtol=5e-4), max_err

    print("KERNEL_OK")
</pallas_src>

<mosaic_0001>
module attributes {stable_mosaic.version = 11 : i64} {
  func.func @affine_kernel(%arg0: i32, %arg1: memref<512x11xf32, #tpu.memory_space<vmem>>, %arg2: memref<4x11xf32, #tpu.memory_space<vmem>>, %arg3: memref<4x1xf32, #tpu.memory_space<vmem>>, %arg4: memref<4x512xf32, #tpu.memory_space<vmem>>) attributes {dimension_semantics = [#tpu.dimension_semantics<parallel>], iteration_bounds = array<i64: 1>, scalar_prefetch = 0 : i64, scratch_operands = 0 : i64, tpu.core_type = #tpu.core_type<tc>, window_params = [{transform_indices = @transform_0, window_bounds = array<i64: 512, 11>}, {pipeline_mode = #tpu.pipeline_mode<synchronous>, transform_indices = @transform_1, window_bounds = array<i64: 4, 11>}, {pipeline_mode = #tpu.pipeline_mode<synchronous>, transform_indices = @transform_2, window_bounds = array<i64: 4, 1>}, {transform_indices = @transform_3, window_bounds = array<i64: 4, 512>}]} {
    %c0 = arith.constant 0 : index
    %c0_0 = arith.constant 0 : index
    %0 = vector.load %arg2[%c0, %c0_0] : memref<4x11xf32, #tpu.memory_space<vmem>>, vector<4x11xf32>
    %c0_1 = arith.constant 0 : index
    %c0_2 = arith.constant 0 : index
    %1 = vector.load %arg1[%c0_1, %c0_2] : memref<512x11xf32, #tpu.memory_space<vmem>>, vector<512x11xf32>
    %cst = arith.constant dense<0.000000e+00> : vector<4x512xf32>
    %2 = tpu.matmul %0, %1, %cst {dimension_numbers = #tpu.dot_dimension_numbers<[1], [1], [0], [0], [0, 0, 1, 0], [], []>} : vector<4x11xf32>, vector<512x11xf32>, vector<4x512xf32> -> vector<4x512xf32>
    %c0_3 = arith.constant 0 : index
    %c0_4 = arith.constant 0 : index
    %3 = vector.load %arg3[%c0_3, %c0_4] : memref<4x1xf32, #tpu.memory_space<vmem>>, vector<4x1xf32>
    %4 = vector.broadcast %3 : vector<4x1xf32> to vector<4x512xf32>
    %5 = arith.addf %2, %4 : vector<4x512xf32>
    %c0_5 = arith.constant 0 : index
    %c0_6 = arith.constant 0 : index
    %6 = vector.load %arg4[%c0_5, %c0_6] : memref<4x512xf32, #tpu.memory_space<vmem>>, vector<4x512xf32>
    tpu.vector_store %arg4[%c0_5, %c0_6], %5 {strides = array<i32>} : memref<4x512xf32, #tpu.memory_space<vmem>>, vector<4x512xf32>,
    return
  }
  func.func @transform_0(%arg0: i32) -> (i32, i32) {
    %c0_i32 = arith.constant 0 : i32
    %c0_i32_0 = arith.constant 0 : i32
    return %arg0, %c0_i32 : i32, i32
  }
  func.func @transform_1(%arg0: i32) -> (i32, i32) {
    %c0_i32 = arith.constant 0 : i32
    %c0_i32_0 = arith.constant 0 : i32
    %c0_i32_1 = arith.constant 0 : i32
    return %c0_i32, %c0_i32_0 : i32, i32
  }
  func.func @transform_2(%arg0: i32) -> (i32, i32) {
    %c0_i32 = arith.constant 0 : i32
    %c0_i32_0 = arith.constant 0 : i32
    %c0_i32_1 = arith.constant 0 : i32
    return %c0_i32, %c0_i32_0 : i32, i32
  }
  func.func @transform_3(%arg0: i32) -> (i32, i32) {
    %c0_i32 = arith.constant 0 : i32
    %c0_i32_0 = arith.constant 0 : i32
    return %c0_i32, %arg0 : i32, i32
  }
}

</mosaic_0001>

<llo_original>
// kernel: fwd.1
$region0: #{fwd.1}
  #allocation0 [shape = 'u32[]', space=smem, size = 0x4, offset = 0x4, fixed_abs, tag = 'smem constant byte address 0x4 - core index']
  #allocation1 [shape = 'u32[144,128]{1,0:T(1,128)}', space=vmem, size = 0x12000, scoped, tag = 'internal scratch']
  %s0 = inlined_call_operand.vmem [shape: f32[512,11], index: 0, kind: input, shape index: {}]
  %s1 = inlined_call_operand.vmem [shape: f32[4,11], index: 1, kind: input, shape index: {}]
  %s2 = inlined_call_operand.vmem [shape: f32[4,1], index: 2, kind: input, shape index: {}]
  %s3 = inlined_call_operand.hbm [shape: f32[4,512], index: 3, kind: output, shape index: {}]
  %s4 = sld [smem:[#allocation0]]
  $region22: #{fwd.1} parent=0
    _
  %s6 = ssub.s32 1, %s4
  %s7 = scalar_select 0, %s6, %s4
  $region1: #{fwd.1} parent=0
    #allocation2 [shape = 'u8[8192]{0}', space=vmem, size = 0x2000, scoped, tag = 'output window, operand 0, single buffered']
    #allocation3 [shape = 's32[1]{0}', space=sflag, size = 0x4, scoped, tag = 'scoped memory for fwd.1']
    %8 = vsyncpa [#allocation3], 0
    // Predicated region
    $region2: #{fwd.1} parent=1 // pred_check
      _
    $region3: #{fwd.1} parent=1 // pred_check_branch
      %10 = sbr.rel (0) target = $region5
    $region4: #{fwd.1} parent=1 // pred_region
      _
    $region5: #{fwd.1} parent=1 // pred_fallthru
      _
    // Predicated region
    $region6: #{fwd.1} parent=1 // pred_check
      _
    $region7: #{fwd.1} parent=1 // pred_check_branch
      %12 = sbr.rel (0) target = $region9
    $region8: #{fwd.1} parent=1 // pred_region
      _
    $region9: #{fwd.1} parent=1 // pred_fallthru
      _
    // Predicated region
    $region10: #{fwd.1} parent=1 // pred_check
      _
    $region11: #{fwd.1} parent=1 // pred_check_branch
      %14 = sbr.rel (0) target = $region13
    $region12: #{fwd.1} parent=1 // pred_region
      _
    $region13: #{fwd.1} parent=1 // pred_fallthru
      _
    %v15 = vld [vmem:[%s1] sm:$0xf]
    %v16 = vld [vmem:[%s0] sm:$0xff]
    %v17 = vld [vmem:[%s0 + $0x8] sm:$0xff]
    %v18 = vld [vmem:[%s0 + $0x10] sm:$0xff]
    %v19 = vld [vmem:[%s0 + $0x18] sm:$0xff]
    %v20 = vld [vmem:[%s0 + $0x20] sm:$0xff]
    %v21 = vld [vmem:[%s0 + $0x28] sm:$0xff]
    %v22 = vld [vmem:[%s0 + $0x30] sm:$0xff]
    %v23 = vld [vmem:[%s0 + $0x38] sm:$0xff]
    %v24 = vld [vmem:[%s0 + $0x40] sm:$0xff]
    %v25 = vld [vmem:[%s0 + $0x48] sm:$0xff]
    %v26 = vld [vmem:[%s0 + $0x50] sm:$0xff]
    %v27 = vld [vmem:[%s0 + $0x58] sm:$0xff]
    %v28 = vld [vmem:[%s0 + $0x60] sm:$0xff]
    %v29 = vld [vmem:[%s0 + $0x68] sm:$0xff]
    %v30 = vld [vmem:[%s0 + $0x70] sm:$0xff]
    %v31 = vld [vmem:[%s0 + $0x78] sm:$0xff]
    %v32 = vld [vmem:[%s0 + $0x80] sm:$0xff]
    %v33 = vld [vmem:[%s0 + $0x88] sm:$0xff]
    %v34 = vld [vmem:[%s0 + $0x90] sm:$0xff]
    %v35 = vld [vmem:[%s0 + $0x98] sm:$0xff]
    %v36 = vld [vmem:[%s0 + $0xa0] sm:$0xff]
    %v37 = vld [vmem:[%s0 + $0xa8] sm:$0xff]
    %v38 = vld [vmem:[%s0 + $0xb0] sm:$0xff]
    %v39 = vld [vmem:[%s0 + $0xb8] sm:$0xff]
    %v40 = vld [vmem:[%s0 + $0xc0] sm:$0xff]
    %v41 = vld [vmem:[%s0 + $0xc8] sm:$0xff]
    %v42 = vld [vmem:[%s0 + $0xd0] sm:$0xff]
    %v43 = vld [vmem:[%s0 + $0xd8] sm:$0xff]
    %v44 = vld [vmem:[%s0 + $0xe0] sm:$0xff]
    %v45 = vld [vmem:[%s0 + $0xe8] sm:$0xff]
    %v46 = vld [vmem:[%s0 + $0xf0] sm:$0xff]
    %v47 = vld [vmem:[%s0 + $0xf8] sm:$0xff]
    %v48 = vld [vmem:[%s0 + $0x100] sm:$0xff]
    %v49 = vld [vmem:[%s0 + $0x108] sm:$0xff]
    %v50 = vld [vmem:[%s0 + $0x110] sm:$0xff]
    %v51 = vld [vmem:[%s0 + $0x118] sm:$0xff]
    %v52 = vld [vmem:[%s0 + $0x120] sm:$0xff]
    %v53 = vld [vmem:[%s0 + $0x128] sm:$0xff]
    %v54 = vld [vmem:[%s0 + $0x130] sm:$0xff]
    %v55 = vld [vmem:[%s0 + $0x138] sm:$0xff]
    %v56 = vld [vmem:[%s0 + $0x140] sm:$0xff]
    %v57 = vld [vmem:[%s0 + $0x148] sm:$0xff]
    %v58 = vld [vmem:[%s0 + $0x150] sm:$0xff]
    %v59 = vld [vmem:[%s0 + $0x158] sm:$0xff]
    %v60 = vld [vmem:[%s0 + $0x160] sm:$0xff]
    %v61 = vld [vmem:[%s0 + $0x168] sm:$0xff]
    %v62 = vld [vmem:[%s0 + $0x170] sm:$0xff]
    %v63 = vld [vmem:[%s0 + $0x178] sm:$0xff]
    %v64 = vld [vmem:[%s0 + $0x180] sm:$0xff]
    %v65 = vld [vmem:[%s0 + $0x188] sm:$0xff]
    %v66 = vld [vmem:[%s0 + $0x190] sm:$0xff]
    %v67 = vld [vmem:[%s0 + $0x198] sm:$0xff]
    %v68 = vld [vmem:[%s0 + $0x1a0] sm:$0xff]
    %v69 = vld [vmem:[%s0 + $0x1a8] sm:$0xff]
    %v70 = vld [vmem:[%s0 + $0x1b0] sm:$0xff]
    %v71 = vld [vmem:[%s0 + $0x1b8] sm:$0xff]
    %v72 = vld [vmem:[%s0 + $0x1c0] sm:$0xff]
    %v73 = vld [vmem:[%s0 + $0x1c8] sm:$0xff]
    %v74 = vld [vmem:[%s0 + $0x1d0] sm:$0xff]
    %v75 = vld [vmem:[%s0 + $0x1d8] sm:$0xff]
    %v76 = vld [vmem:[%s0 + $0x1e0] sm:$0xff]
    %v77 = vld [vmem:[%s0 + $0x1e8] sm:$0xff]
    %v78 = vld [vmem:[%s0 + $0x1f0] sm:$0xff]
    %v79 = vld [vmem:[%s0 + $0x1f8] sm:$0xff]
    %v80 = vld [vmem:[%s2] sm:$0xf]
    %82 = vset.pattern.permute.xlu0 0
    %83 = vperm.xlu0 %82, %v80
    %v84 = vpop.permute.xlu0 %83
    %vm86 = vcmask 89088
    %v88 = vsel %vm86, %v15, 0
    %v91 = vsel %vm86, %v16, 0
    %v94 = vsel %vm86, %v17, 0
    %v97 = vsel %vm86, %v18, 0
    %v100 = vsel %vm86, %v19, 0
    %v103 = vsel %vm86, %v20, 0
    %v106 = vsel %vm86, %v21, 0
    %v109 = vsel %vm86, %v22, 0
    %v112 = vsel %vm86, %v23, 0
    %v115 = vsel %vm86, %v24, 0
    %v118 = vsel %vm86, %v25, 0
    %v121 = vsel %vm86, %v26, 0
    %v124 = vsel %vm86, %v27, 0
    %v127 = vsel %vm86, %v28, 0
    %v130 = vsel %vm86, %v29, 0
    %v133 = vsel %vm86, %v30, 0
    %v136 = vsel %vm86, %v31, 0
    %v139 = vsel %vm86, %v32, 0
    %v142 = vsel %vm86, %v33, 0
    %v145 = vsel %vm86, %v34, 0
    %v148 = vsel %vm86, %v35, 0
    %v151 = vsel %vm86, %v36, 0
    %v154 = vsel %vm86, %v37, 0
    %v157 = vsel %vm86, %v38, 0
    %v160 = vsel %vm86, %v39, 0
    %v163 = vsel %vm86, %v40, 0
    %v166 = vsel %vm86, %v41, 0
    %v169 = vsel %vm86, %v42, 0
    %v172 = vsel %vm86, %v43, 0
    %v175 = vsel %vm86, %v44, 0
    %v178 = vsel %vm86, %v45, 0
    %v181 = vsel %vm86, %v46, 0
    %v184 = vsel %vm86, %v47, 0
    %v187 = vsel %vm86, %v48, 0
    %v190 = vsel %vm86, %v49, 0
    %v193 = vsel %vm86, %v50, 0
    %v196 = vsel %vm86, %v51, 0
    %v199 = vsel %vm86, %v52, 0
    %v202 = vsel %vm86, %v53, 0
    %v205 = vsel %vm86, %v54, 0
    %v208 = vsel %vm86, %v55, 0
    %v211 = vsel %vm86, %v56, 0
    %v214 = vsel %vm86, %v57, 0
    %v217 = vsel %vm86, %v58, 0
    %v220 = vsel %vm86, %v59, 0
    %v223 = vsel %vm86, %v60, 0
    %v226 = vsel %vm86, %v61, 0
    %v229 = vsel %vm86, %v62, 0
    %v232 = vsel %vm86, %v63, 0
    %v235 = vsel %vm86, %v64, 0
    %v238 = vsel %vm86, %v65, 0
    %v241 = vsel %vm86, %v66, 0
    %v244 = vsel %vm86, %v67, 0
    %v247 = vsel %vm86, %v68, 0
    %v250 = vsel %vm86, %v69, 0
    %v253 = vsel %vm86, %v70, 0
    %v256 = vsel %vm86, %v71, 0
    %v259 = vsel %vm86, %v72, 0
    %v262 = vsel %vm86, %v73, 0
    %v265 = vsel %vm86, %v74, 0
    %v268 = vsel %vm86, %v75, 0
    %v271 = vsel %vm86, %v76, 0
    %v274 = vsel %vm86, %v77, 0
    %v277 = vsel %vm86, %v78, 0
    %v280 = vsel %vm86, %v79, 0
    %282 = vmatprep.subr.mxu0 0.0
    %283 = vmatpush1.xpose.msra.mxu0 %v136
    %284 = vmatprep.subr.mxu0 0.0
    %285 = vmatpush1.xpose.msra.mxu0 %v133
    %286 = vmatprep.subr.mxu0 0.0
    %287 = vmatpush1.xpose.msra.mxu0 %v130
    %288 = vmatprep.subr.mxu0 0.0
    %289 = vmatpush1.xpose.msra.mxu0 %v127
    %290 = vmatprep.subr.mxu0 0.0
    %291 = vmatpush1.xpose.msra.mxu0 %v124
    %292 = vmatprep.subr.mxu0 0.0
    %293 = vmatpush1.xpose.msra.mxu0 %v121
    %294 = vmatprep.subr.mxu0 0.0
    %295 = vmatpush1.xpose.msra.mxu0 %v118
    %296 = vmatprep.subr.mxu0 0.0
    %297 = vmatpush1.xpose.msra.mxu0 %v115
    %298 = vmatprep.subr.mxu0 0.0
    %299 = vmatpush1.xpose.msra.mxu0 %v112
    %300 = vmatprep.subr.mxu0 0.0
    %301 = vmatpush1.xpose.msra.mxu0 %v109
    %302 = vmatprep.subr.mxu0 0.0
    %303 = vmatpush1.xpose.msra.mxu0 %v106
    %304 = vmatprep.subr.mxu0 0.0
    %305 = vmatpush1.xpose.msra.mxu0 %v103
    %306 = vmatprep.subr.mxu0 0.0
    %307 = vmatpush1.xpose.msra.mxu0 %v100
    %308 = vmatprep.subr.mxu0 0.0
    %309 = vmatpush1.xpose.msra.mxu0 %v97
    %310 = vmatprep.subr.mxu0 0.0
    %311 = vmatpush1.xpose.msra.mxu0 %v94
    %312 = vmatprep.subr.mxu0 0.0
    %313 = vmatpush1.xpose.msra.mxu0 %v91
    %314 = vmatprep.subr.mxu0 0.0
    %315 = vmatpush2.xpose.msra.mxu0 %v184
    %316 = vmatprep.subr.mxu0 0.0
    %317 = vmatpush2.xpose.msra.mxu0 %v181
    %318 = vmatprep.subr.mxu0 0.0
    %319 = vmatpush2.xpose.msra.mxu0 %v178
    %320 = vmatprep.subr.mxu0 0.0
    %321 = vmatpush2.xpose.msra.mxu0 %v175
    %322 = vmatprep.subr.mxu0 0.0
    %323 = vmatpush2.xpose.msra.mxu0 %v172
    %324 = vmatprep.subr.mxu0 0.0
    %325 = vmatpush2.xpose.msra.mxu0 %v169
    %326 = vmatprep.subr.mxu0 0.0
    %327 = vmatpush2.xpose.msra.mxu0 %v166
    %328 = vmatprep.subr.mxu0 0.0
    %329 = vmatpush2.xpose.msra.mxu0 %v163
    %330 = vmatprep.subr.mxu0 0.0
    %331 = vmatpush2.xpose.msra.mxu0 %v160
    %332 = vmatprep.subr.mxu0 0.0
    %333 = vmatpush2.xpose.msra.mxu0 %v157
    %334 = vmatprep.subr.mxu0 0.0
    %335 = vmatpush2.xpose.msra.mxu0 %v154
    %336 = vmatprep.subr.mxu0 0.0
    %337 = vmatpush2.xpose.msra.mxu0 %v151
    %338 = vmatprep.subr.mxu0 0.0
    %339 = vmatpush2.xpose.msra.mxu0 %v148
    %340 = vmatprep.subr.mxu0 0.0
    %341 = vmatpush2.xpose.msra.mxu0 %v145
    %342 = vmatprep.subr.mxu0 0.0
    %343 = vmatpush2.xpose.msra.mxu0 %v142
    %344 = vmatprep.subr.mxu0 0.0
    %345 = vmatpush2.xpose.msra.mxu0 %v139
    %346 = vmatprep.mubr.f32.mxu0 0.0
    %347 = vmatmul.mubr.f32.gmra.mxu0 %v88
    %v348 = vpop.f32.mrf.mxu0
    %v349 = vadd.f32 %v84, %v348
    %v350 = vpop.f32.mrf.mxu0
    %v351 = vadd.f32 %v84, %v350
    %352 = vdwg.mxu0
    %353 = vmatprep.subr.mxu0 0.0
    %354 = vmatpush1.xpose.msra.mxu0 %v232
    %355 = vmatprep.subr.mxu0 0.0
    %356 = vmatpush1.xpose.msra.mxu0 %v229
    %357 = vmatprep.subr.mxu0 0.0
    %358 = vmatpush1.xpose.msra.mxu0 %v226
    %359 = vmatprep.subr.mxu0 0.0
    %360 = vmatpush1.xpose.msra.mxu0 %v223
    %361 = vmatprep.subr.mxu0 0.0
    %362 = vmatpush1.xpose.msra.mxu0 %v220
    %363 = vmatprep.subr.mxu0 0.0
    %364 = vmatpush1.xpose.msra.mxu0 %v217
    %365 = vmatprep.subr.mxu0 0.0
    %366 = vmatpush1.xpose.msra.mxu0 %v214
    %367 = vmatprep.subr.mxu0 0.0
    %368 = vmatpush1.xpose.msra.mxu0 %v211
    %369 = vmatprep.subr.mxu0 0.0
    %370 = vmatpush1.xpose.msra.mxu0 %v208
    %371 = vmatprep.subr.mxu0 0.0
    %372 = vmatpush1.xpose.msra.mxu0 %v205
    %373 = vmatprep.subr.mxu0 0.0
    %374 = vmatpush1.xpose.msra.mxu0 %v202
    %375 = vmatprep.subr.mxu0 0.0
    %376 = vmatpush1.xpose.msra.mxu0 %v199
    %377 = vmatprep.subr.mxu0 0.0
    %378 = vmatpush1.xpose.msra.mxu0 %v196
    %379 = vmatprep.subr.mxu0 0.0
    %380 = vmatpush1.xpose.msra.mxu0 %v193
    %381 = vmatprep.subr.mxu0 0.0
    %382 = vmatpush1.xpose.msra.mxu0 %v190
    %383 = vmatprep.subr.mxu0 0.0
    %384 = vmatpush1.xpose.msra.mxu0 %v187
    %385 = vmatprep.subr.mxu0 0.0
    %386 = vmatpush2.xpose.msra.mxu0 %v280
    %387 = vmatprep.subr.mxu0 0.0
    %388 = vmatpush2.xpose.msra.mxu0 %v277
    %389 = vmatprep.subr.mxu0 0.0
    %390 = vmatpush2.xpose.msra.mxu0 %v274
    %391 = vmatprep.subr.mxu0 0.0
    %392 = vmatpush2.xpose.msra.mxu0 %v271
    %393 = vmatprep.subr.mxu0 0.0
    %394 = vmatpush2.xpose.msra.mxu0 %v268
    %395 = vmatprep.subr.mxu0 0.0
    %396 = vmatpush2.xpose.msra.mxu0 %v265
    %397 = vmatprep.subr.mxu0 0.0
    %398 = vmatpush2.xpose.msra.mxu0 %v262
    %399 = vmatprep.subr.mxu0 0.0
    %400 = vmatpush2.xpose.msra.mxu0 %v259
    %401 = vmatprep.subr.mxu0 0.0
    %402 = vmatpush2.xpose.msra.mxu0 %v256
    %403 = vmatprep.subr.mxu0 0.0
    %404 = vmatpush2.xpose.msra.mxu0 %v253
    %405 = vmatprep.subr.mxu0 0.0
    %406 = vmatpush2.xpose.msra.mxu0 %v250
    %407 = vmatprep.subr.mxu0 0.0
    %408 = vmatpush2.xpose.msra.mxu0 %v247
    %409 = vmatprep.subr.mxu0 0.0
    %410 = vmatpush2.xpose.msra.mxu0 %v244
    %411 = vmatprep.subr.mxu0 0.0
    %412 = vmatpush2.xpose.msra.mxu0 %v241
    %413 = vmatprep.subr.mxu0 0.0
    %414 = vmatpush2.xpose.msra.mxu0 %v238
    %415 = vmatprep.subr.mxu0 0.0
    %416 = vmatpush2.xpose.msra.mxu0 %v235
    %417 = vmatprep.mubr.f32.mxu0 0.0
    %418 = vmatmul.mubr.f32.gmra.mxu0 %v88
    %v419 = vpop.f32.mrf.mxu0
    %v420 = vadd.f32 %v84, %v419
    %v421 = vpop.f32.mrf.mxu0
    %v422 = vadd.f32 %v84, %v421
    %423 = vdwg.mxu0
    %v428 = vcombine.low %v349, %v351
    %v429 = vcombine.low %v420, %v422
    %432 = vst [vmem:[#allocation2] sm:$0xff] %v428
    %433 = vst [vmem:[#allocation2 + $0x8] sm:$0xff] %v429
    // Predicated region
    $region14: #{fwd.1} parent=1 // pred_check
      _
    $region15: #{fwd.1} parent=1 // pred_check_branch
      %435 = sbr.rel (0) target = $region17
    $region16: #{fwd.1} parent=1 // pred_region
      %s437 = ssub.s32 256, 256
      %438 = vsyncadd [#allocation3], %s437
      %s440 = sshll.u32 [#allocation2], 4
      %s441 = int_to_ptr.vmem [resolvable:$true] %s440
      %443 = dma.vmem_to_hbm [thread:$0]  %s441, 256, %s3, [#allocation3]
    $region17: #{fwd.1} parent=1 // pred_fallthru
      _
    // Predicated region
    $region18: #{fwd.1} parent=1 // pred_check
      _
    $region19: #{fwd.1} parent=1 // pred_check_branch
      %445 = sbr.rel (0) target = $region21
    $region20: #{fwd.1} parent=1 // pred_region
      %446 = dma.done [#allocation3], 256
    $region21: #{fwd.1} parent=1 // pred_fallthru
      _
    %447 = vsyncpa [#allocation3], 1

</llo_original>
